<compile_context>
chip_gen: v7x
topology: tpu7x:2x2x1
jax: 0.10.0
libtpu: 0.0.40
codegen_flags: <defaults>
</compile_context>

<pallas_src>
import functools

import jax
import jax.numpy as jnp
from jax.experimental import pallas as pl
from jax.experimental.pallas import tpu as pltpu

IN_DIM = 4        # iris features
HIDDEN = 50       # logical hidden width (as in the PyTorch module)
OUT_DIM = 3       # iris classes
H_PAD = 128       # lane-aligned hidden width
O_MM = 128        # lane-aligned layer-3 matmul width
O_OUT = 8         # stored output width (>= OUT_DIM, lane-mask-cheap)
NEG_BIG = -1e30   # bias for padded logit columns -> exp() underflows to 0


def _round_up(n, m):
    return (n + m - 1) // m * m


def pick_elem_dtype():
    """bf16 elementwise on chips with a bf16 VPU (v6e/v7x); f32 otherwise (v5e)."""
    try:
        kind = jax.devices()[0].device_kind.lower()
    except Exception:
        return jnp.float32
    if any(tag in kind for tag in ("v6", "v7", "tpu7")):
        return jnp.bfloat16
    return jnp.float32


def mlp_softmax_kernel(x_ref, w1_ref, b1_ref, w2_ref, b2_ref, w3_ref, b3_ref,
                       o_ref, *, elem_dtype):
    # Layer 1: (TB, 4) @ (4, 128) -> (TB, 128). bf16 MXU operands, f32 accum.
    # TODO(synk): K=4 keeps the MXU mostly idle on this push; acceptable while
    # the layer-2/3 matmuls dominate the vex slot.
    x = x_ref[...]                                            # already bf16
    h1 = jnp.dot(x, w1_ref[...], preferred_element_type=jnp.float32)
    h1 = jnp.maximum(h1.astype(elem_dtype) + b1_ref[...].astype(elem_dtype), 0.0)

    # Layer 2: (TB, 128) @ (128, 128)
    h2 = jnp.dot(h1.astype(jnp.bfloat16), w2_ref[...],
                 preferred_element_type=jnp.float32)
    h2 = jnp.maximum(h2.astype(elem_dtype) + b2_ref[...].astype(elem_dtype), 0.0)

    # Layer 3 + softmax (f32). Padded logit columns carry bias -1e30, so after
    # slicing to the first O_OUT lanes the extra columns exp() to exactly 0 and
    # the max/sum reductions equal the softmax over the 3 real classes.
    logits = jnp.dot(h2.astype(jnp.bfloat16), w3_ref[...],
                     preferred_element_type=jnp.float32) + b3_ref[...]
    logits = logits[:, :O_OUT]                                # (TB, 8)
    m = jnp.max(logits, axis=-1, keepdims=True)
    e = jnp.exp(logits - m)
    denom = jnp.sum(e, axis=-1, keepdims=True)
    # Division moved to the EUP via approx reciprocal (denom >= 1 here).
    o_ref[...] = e * pl.reciprocal(denom, approx=True)        # (TB, 8) f32


def init_params(key, input_dim=IN_DIM, hidden=HIDDEN, out_dim=OUT_DIM):
    """Deterministic init mimicking nn.Linear's uniform(-1/sqrt(fan_in), ...).

    Weights are stored (in_features, out_features), i.e. transposed w.r.t.
    nn.Linear.weight, so the kernel computes plain x @ W + b.
    """
    ks = jax.random.split(key, 6)

    def linear(kw, kb, fan_in, fan_out):
        bound = 1.0 / jnp.sqrt(float(fan_in))
        w = jax.random.uniform(kw, (fan_in, fan_out), jnp.float32, -bound, bound)
        b = jax.random.uniform(kb, (1, fan_out), jnp.float32, -bound, bound)
        return w, b

    w1, b1 = linear(ks[0], ks[1], input_dim, hidden)
    w2, b2 = linear(ks[2], ks[3], hidden, hidden)
    w3, b3 = linear(ks[4], ks[5], hidden, out_dim)
    return (w1, b1, w2, b2, w3, b3)


def prepare_params(params):
    """One-time preprocessing: zero-pad to (8,128)-aligned shapes, bf16 weights.

    Zero rows/cols are inert through matmul + ReLU; b3's padded columns are set
    to -1e30 so they vanish under softmax.
    """
    w1, b1, w2, b2, w3, b3 = params
    w1p = jnp.zeros((IN_DIM, H_PAD), jnp.float32).at[:, :HIDDEN].set(w1)
    b1p = jnp.zeros((1, H_PAD), jnp.float32).at[:, :HIDDEN].set(b1)
    w2p = jnp.zeros((H_PAD, H_PAD), jnp.float32).at[:HIDDEN, :HIDDEN].set(w2)
    b2p = jnp.zeros((1, H_PAD), jnp.float32).at[:, :HIDDEN].set(b2)
    w3p = jnp.zeros((H_PAD, O_MM), jnp.float32).at[:HIDDEN, :OUT_DIM].set(w3)
    b3p = jnp.full((1, O_MM), NEG_BIG, jnp.float32).at[:, :OUT_DIM].set(b3)
    return (w1p.astype(jnp.bfloat16), b1p,
            w2p.astype(jnp.bfloat16), b2p,
            w3p.astype(jnp.bfloat16), b3p)


@functools.partial(jax.jit, static_argnames=("block_rows", "elem_dtype"))
def mlp_forward(x, padded_params, block_rows=2048, elem_dtype=jnp.float32):
    """Full MLP forward in one Pallas call, tiled over the batch axis."""
    w1, b1, w2, b2, w3, b3 = padded_params
    batch = x.shape[0]
    b_pad = _round_up(batch, 8)                  # sublane-aligned batch
    # >=2 grid steps once batch >= 16 (both v7x TensorCores busy), capped at
    # block_rows so per-step compute amortizes the pipeline overhead.
    tb = min(block_rows, max(8, _round_up(pl.cdiv(b_pad, 2), 8)))

    x = x.astype(jnp.bfloat16)                   # halve streamed DMA bytes
    if b_pad != batch:
        x = jnp.pad(x, ((0, b_pad - batch), (0, 0)))

    grid = (pl.cdiv(b_pad, tb),)

    # Weights/biases: same block every step -> loaded into VMEM once.
    resident = lambda a: pl.BlockSpec(a.shape, lambda i: (0, 0))

    flops = 2 * b_pad * (IN_DIM * H_PAD + H_PAD * H_PAD + H_PAD * O_MM)
    bytes_accessed = (x.size * 2                               # bf16 activations
                      + (w1.size + w2.size + w3.size) * 2      # bf16 weights
                      + (b1.size + b2.size + b3.size) * 4      # f32 biases
                      + b_pad * O_OUT * 4)                     # f32 out (8-wide)

    kernel = functools.partial(mlp_softmax_kernel, elem_dtype=elem_dtype)

    out = pl.pallas_call(
        kernel,
        out_shape=jax.ShapeDtypeStruct((b_pad, O_OUT), jnp.float32),
        grid=grid,
        in_specs=[
            pl.BlockSpec((tb, IN_DIM), lambda i: (i, 0)),      # streamed x
            resident(w1), resident(b1),
            resident(w2), resident(b2),
            resident(w3), resident(b3),
        ],
        out_specs=pl.BlockSpec((tb, O_OUT), lambda i: (i, 0)),
        compiler_params=pltpu.CompilerParams(
            dimension_semantics=("parallel",)),                # 2 TCs on v7x
        cost_estimate=pl.CostEstimate(
            flops=flops,
            transcendentals=b_pad * (O_OUT + 1),
            bytes_accessed=bytes_accessed),
    )(x, w1, b1, w2, b2, w3, b3)

    return out[:batch, :OUT_DIM]


def mlp_reference(x, params):
    """Pure-f32 reference — exact math of the PyTorch module."""
    w1, b1, w2, b2, w3, b3 = params
    h1 = jax.nn.relu(x @ w1 + b1)
    h2 = jax.nn.relu(h1 @ w2 + b2)
    return jax.nn.softmax(h2 @ w3 + b3, axis=1)


def mlp_reference_matched(x, padded_params, elem_dtype):
    """JAX reference with the same mixed-precision recipe as the kernel."""
    w1, b1, w2, b2, w3, b3 = padded_params
    xb = x.astype(jnp.bfloat16)
    h1 = jnp.dot(xb, w1, preferred_element_type=jnp.float32)
    h1 = jnp.maximum(h1.astype(elem_dtype) + b1.astype(elem_dtype), 0.0)
    h2 = jnp.dot(h1.astype(jnp.bfloat16), w2, preferred_element_type=jnp.float32)
    h2 = jnp.maximum(h2.astype(elem_dtype) + b2.astype(elem_dtype), 0.0)
    logits = jnp.dot(h2.astype(jnp.bfloat16), w3,
                     preferred_element_type=jnp.float32) + b3
    return jax.nn.softmax(logits, axis=1)[:, :OUT_DIM]


if __name__ == "__main__":
    key = jax.random.PRNGKey(0)
    k_x, k_p = jax.random.split(key)

    params = init_params(k_p)
    padded = prepare_params(params)
    elem_dtype = pick_elem_dtype()

    # batch=8 -> single grid step; batch=50 -> 2 grid steps with a partial
    # (masked) last block, exercising the multi-step/megacore path.
    for batch in (8, 50):
        x = jax.random.normal(jax.random.fold_in(k_x, batch),
                              (batch, IN_DIM), jnp.float32)

        out = jax.block_until_ready(mlp_forward(x, padded, elem_dtype=elem_dtype))
        assert out.shape == (batch, OUT_DIM)

        # Tight check vs a JAX reference using the same mixed precision.
        ref_matched = mlp_reference_matched(x, padded, elem_dtype)
        assert jnp.allclose(out, ref_matched, atol=5e-3, rtol=1e-2), \
            f"batch={batch}: mismatch vs matched-precision reference"

        # Loose check vs pure-f32 math (difference is the intended bf16 cast).
        ref_f32 = mlp_reference(x, params)
        assert jnp.allclose(out, ref_f32, atol=3e-2, rtol=3e-2), \
            f"batch={batch}: mismatch vs f32 reference"

        assert jnp.allclose(jnp.sum(out, axis=1), 1.0, atol=5e-3), \
            f"batch={batch}: softmax rows must sum to 1"

    print("KERNEL_OK")
</pallas_src>

<mosaic_0001>
module attributes {stable_mosaic.version = 11 : i64} {
  func.func @mlp_softmax_kernel(%arg0: i32, %arg1: memref<8x4xbf16, #tpu.memory_space<vmem>>, %arg2: memref<4x128xbf16, #tpu.memory_space<vmem>>, %arg3: memref<1x128xf32, #tpu.memory_space<vmem>>, %arg4: memref<128x128xbf16, #tpu.memory_space<vmem>>, %arg5: memref<1x128xf32, #tpu.memory_space<vmem>>, %arg6: memref<128x128xbf16, #tpu.memory_space<vmem>>, %arg7: memref<1x128xf32, #tpu.memory_space<vmem>>, %arg8: memref<8x8xf32, #tpu.memory_space<vmem>>) attributes {dimension_semantics = [#tpu.dimension_semantics<parallel>], iteration_bounds = array<i64: 1>, scalar_prefetch = 0 : i64, scratch_operands = 0 : i64, tpu.core_type = #tpu.core_type<tc>, window_params = [{transform_indices = @transform_0, window_bounds = array<i64: 8, 4>}, {pipeline_mode = #tpu.pipeline_mode<synchronous>, transform_indices = @transform_1, window_bounds = array<i64: 4, 128>}, {pipeline_mode = #tpu.pipeline_mode<synchronous>, transform_indices = @transform_2, window_bounds = array<i64: 1, 128>}, {pipeline_mode = #tpu.pipeline_mode<synchronous>, transform_indices = @transform_3, window_bounds = array<i64: 128, 128>}, {pipeline_mode = #tpu.pipeline_mode<synchronous>, transform_indices = @transform_4, window_bounds = array<i64: 1, 128>}, {pipeline_mode = #tpu.pipeline_mode<synchronous>, transform_indices = @transform_5, window_bounds = array<i64: 128, 128>}, {pipeline_mode = #tpu.pipeline_mode<synchronous>, transform_indices = @transform_6, window_bounds = array<i64: 1, 128>}, {transform_indices = @transform_7, window_bounds = array<i64: 8, 8>}]} {
    %c0 = arith.constant 0 : index
    %c0_0 = arith.constant 0 : index
    %0 = vector.load %arg1[%c0, %c0_0] : memref<8x4xbf16, #tpu.memory_space<vmem>>, vector<8x4xbf16>
    %c0_1 = arith.constant 0 : index
    %c0_2 = arith.constant 0 : index
    %1 = vector.load %arg2[%c0_1, %c0_2] : memref<4x128xbf16, #tpu.memory_space<vmem>>, vector<4x128xbf16>
    %cst = arith.constant dense<0.000000e+00> : vector<8x128xf32>
    %2 = tpu.matmul %0, %1, %cst {dimension_numbers = #tpu.dot_dimension_numbers<[1], [0], [0], [1], [0, 0, 1, 1], [], []>} : vector<8x4xbf16>, vector<4x128xbf16>, vector<8x128xf32> -> vector<8x128xf32>
    %c0_3 = arith.constant 0 : index
    %c0_4 = arith.constant 0 : index
    %3 = vector.load %arg3[%c0_3, %c0_4] : memref<1x128xf32, #tpu.memory_space<vmem>>, vector<1x128xf32>
    %4 = vector.broadcast %3 : vector<1x128xf32> to vector<8x128xf32>
    %5 = arith.addf %2, %4 : vector<8x128xf32>
    %cst_5 = arith.constant 0.000000e+00 : f32
    %6 = vector.broadcast %cst_5 : f32 to vector<8x128xf32>
    %7 = arith.maximumf %5, %6 : vector<8x128xf32>
    %8 = arith.truncf %7 : vector<8x128xf32> to vector<8x128xbf16>
    %c0_6 = arith.constant 0 : index
    %c0_7 = arith.constant 0 : index
    %9 = vector.load %arg4[%c0_6, %c0_7] : memref<128x128xbf16, #tpu.memory_space<vmem>>, vector<128x128xbf16>
    %cst_8 = arith.constant dense<0.000000e+00> : vector<8x128xf32>
    %10 = tpu.matmul %8, %9, %cst_8 {dimension_numbers = #tpu.dot_dimension_numbers<[1], [0], [0], [1], [0, 0, 1, 1], [], []>} : vector<8x128xbf16>, vector<128x128xbf16>, vector<8x128xf32> -> vector<8x128xf32>
    %c0_9 = arith.constant 0 : index
    %c0_10 = arith.constant 0 : index
    %11 = vector.load %arg5[%c0_9, %c0_10] : memref<1x128xf32, #tpu.memory_space<vmem>>, vector<1x128xf32>
    %12 = vector.broadcast %11 : vector<1x128xf32> to vector<8x128xf32>
    %13 = arith.addf %10, %12 : vector<8x128xf32>
    %cst_11 = arith.constant 0.000000e+00 : f32
    %14 = vector.broadcast %cst_11 : f32 to vector<8x128xf32>
    %15 = arith.maximumf %13, %14 : vector<8x128xf32>
    %16 = arith.truncf %15 : vector<8x128xf32> to vector<8x128xbf16>
    %c0_12 = arith.constant 0 : index
    %c0_13 = arith.constant 0 : index
    %17 = vector.load %arg6[%c0_12, %c0_13] : memref<128x128xbf16, #tpu.memory_space<vmem>>, vector<128x128xbf16>
    %cst_14 = arith.constant dense<0.000000e+00> : vector<8x128xf32>
    %18 = tpu.matmul %16, %17, %cst_14 {dimension_numbers = #tpu.dot_dimension_numbers<[1], [0], [0], [1], [0, 0, 1, 1], [], []>} : vector<8x128xbf16>, vector<128x128xbf16>, vector<8x128xf32> -> vector<8x128xf32>
    %c0_15 = arith.constant 0 : index
    %c0_16 = arith.constant 0 : index
    %19 = vector.load %arg7[%c0_15, %c0_16] : memref<1x128xf32, #tpu.memory_space<vmem>>, vector<1x128xf32>
    %20 = vector.broadcast %19 : vector<1x128xf32> to vector<8x128xf32>
    %21 = arith.addf %18, %20 : vector<8x128xf32>
    %22 = vector.extract_strided_slice %21 {offsets = [0, 0], sizes = [8, 8], strides = [1, 1]} : vector<8x128xf32> to vector<8x8xf32>
    %cst_17 = arith.constant dense<0xFF800000> : vector<8xf32>
    %23 = vector.multi_reduction <maximumf>, %22, %cst_17 [1] : vector<8x8xf32> to vector<8xf32>
    %24 = vector.shape_cast %23 : vector<8xf32> to vector<8x1xf32>
    %25 = vector.broadcast %24 : vector<8x1xf32> to vector<8x8xf32>
    %26 = arith.subf %22, %25 : vector<8x8xf32>
    %27 = math.exp %26 : vector<8x8xf32>
    %cst_18 = arith.constant dense<0.000000e+00> : vector<8xf32>
    %28 = vector.multi_reduction <add>, %27, %cst_18 [1] : vector<8x8xf32> to vector<8xf32>
    %29 = vector.shape_cast %28 : vector<8xf32> to vector<8x1xf32>
    %30 = tpu.reciprocal %29 {approx = true} : vector<8x1xf32> -> vector<8x1xf32>
    %31 = vector.broadcast %30 : vector<8x1xf32> to vector<8x8xf32>
    %32 = arith.mulf %27, %31 : vector<8x8xf32>
    %c0_19 = arith.constant 0 : index
    %c0_20 = arith.constant 0 : index
    %33 = vector.load %arg8[%c0_19, %c0_20] : memref<8x8xf32, #tpu.memory_space<vmem>>, vector<8x8xf32>
    tpu.vector_store %arg8[%c0_19, %c0_20], %32 {strides = array<i32>} : memref<8x8xf32, #tpu.memory_space<vmem>>, vector<8x8xf32>,
    return
  }
  func.func @transform_0(%arg0: i32) -> (i32, i32) {
    %c0_i32 = arith.constant 0 : i32
    %c0_i32_0 = arith.constant 0 : i32
    return %arg0, %c0_i32 : i32, i32
  }
  func.func @transform_1(%arg0: i32) -> (i32, i32) {
    %c0_i32 = arith.constant 0 : i32
    %c0_i32_0 = arith.constant 0 : i32
    %c0_i32_1 = arith.constant 0 : i32
    return %c0_i32, %c0_i32_0 : i32, i32
  }
  func.func @transform_2(%arg0: i32) -> (i32, i32) {
    %c0_i32 = arith.constant 0 : i32
    %c0_i32_0 = arith.constant 0 : i32
    %c0_i32_1 = arith.constant 0 : i32
    return %c0_i32, %c0_i32_0 : i32, i32
  }
  func.func @transform_3(%arg0: i32) -> (i32, i32) {
    %c0_i32 = arith.constant 0 : i32
    %c0_i32_0 = arith.constant 0 : i32
    %c0_i32_1 = arith.constant 0 : i32
    return %c0_i32, %c0_i32_0 : i32, i32
  }
  func.func @transform_4(%arg0: i32) -> (i32, i32) {
    %c0_i32 = arith.constant 0 : i32
    %c0_i32_0 = arith.constant 0 : i32
    %c0_i32_1 = arith.constant 0 : i32
    return %c0_i32, %c0_i32_0 : i32, i32
  }
  func.func @transform_5(%arg0: i32) -> (i32, i32) {
    %c0_i32 = arith.constant 0 : i32
    %c0_i32_0 = arith.constant 0 : i32
    %c0_i32_1 = arith.constant 0 : i32
    return %c0_i32, %c0_i32_0 : i32, i32
  }
  func.func @transform_6(%arg0: i32) -> (i32, i32) {
    %c0_i32 = arith.constant 0 : i32
    %c0_i32_0 = arith.constant 0 : i32
    %c0_i32_1 = arith.constant 0 : i32
    return %c0_i32, %c0_i32_0 : i32, i32
  }
  func.func @transform_7(%arg0: i32) -> (i32, i32) {
    %c0_i32 = arith.constant 0 : i32
    %c0_i32_0 = arith.constant 0 : i32
    return %arg0, %c0_i32 : i32, i32
  }
}

</mosaic_0001>

<llo_original>
// kernel: mlp_forward.1
$region0: #{mlp_forward.1}
  #allocation0 [shape = 'u32[]', space=smem, size = 0x4, offset = 0x4, fixed_abs, tag = 'smem constant byte address 0x4 - core index']
  #allocation1 [shape = 'u32[144,128]{1,0:T(1,128)}', space=vmem, size = 0x12000, scoped, tag = 'internal scratch']
  %s0 = inlined_call_operand.vmem [shape: bf16[8,4], index: 0, kind: input, shape index: {}]
  %s1 = inlined_call_operand.vmem [shape: bf16[4,128], index: 1, kind: input, shape index: {}]
  %s2 = inlined_call_operand.vmem [shape: f32[1,128], index: 2, kind: input, shape index: {}]
  %s3 = inlined_call_operand.hbm [shape: bf16[128,128], index: 3, kind: input, shape index: {}]
  %s4 = inlined_call_operand.vmem [shape: f32[1,128], index: 4, kind: input, shape index: {}]
  %s5 = inlined_call_operand.hbm [shape: bf16[128,128], index: 5, kind: input, shape index: {}]
  %s6 = inlined_call_operand.vmem [shape: f32[1,128], index: 6, kind: input, shape index: {}]
  %s7 = inlined_call_operand.vmem [shape: f32[8,8], index: 7, kind: output, shape index: {}]
  %s8 = sld [smem:[#allocation0]]
  $region46: #{mlp_forward.1} parent=0
    _
  %s10 = ssub.s32 1, %s8
  %s11 = scalar_select 0, %s10, %s8
  $region1: #{mlp_forward.1} parent=0
    #allocation2 [shape = 'u8[32768]{0}', space=vmem, size = 0x8000, scoped, tag = 'input window, operand 3, single buffered']
    #allocation3 [shape = 's32[1]{0}', space=sflag, size = 0x4, scoped, tag = 'scoped memory for mlp_forward.1']
    #allocation4 [shape = 'u8[32768]{0}', space=vmem, size = 0x8000, scoped, tag = 'input window, operand 5, single buffered']
    #allocation5 [shape = 's32[1]{0}', space=sflag, size = 0x4, scoped, tag = 'scoped memory for mlp_forward.1']
    %12 = vsyncpa [#allocation3], 0
    %13 = vsyncpa [#allocation5], 0
    // Predicated region
    $region2: #{mlp_forward.1} parent=1 // pred_check
      _
    $region3: #{mlp_forward.1} parent=1 // pred_check_branch
      %15 = sbr.rel (0) target = $region5
    $region4: #{mlp_forward.1} parent=1 // pred_region
      _
    $region5: #{mlp_forward.1} parent=1 // pred_fallthru
      _
    // Predicated region
    $region6: #{mlp_forward.1} parent=1 // pred_check
      _
    $region7: #{mlp_forward.1} parent=1 // pred_check_branch
      %17 = sbr.rel (0) target = $region9
    $region8: #{mlp_forward.1} parent=1 // pred_region
      _
    $region9: #{mlp_forward.1} parent=1 // pred_fallthru
      _
    // Predicated region
    $region10: #{mlp_forward.1} parent=1 // pred_check
      _
    $region11: #{mlp_forward.1} parent=1 // pred_check_branch
      %19 = sbr.rel (0) target = $region13
    $region12: #{mlp_forward.1} parent=1 // pred_region
      _
    $region13: #{mlp_forward.1} parent=1 // pred_fallthru
      _
    // Predicated region
    $region14: #{mlp_forward.1} parent=1 // pred_check
      _
    $region15: #{mlp_forward.1} parent=1 // pred_check_branch
      %21 = sbr.rel (0) target = $region17
    $region16: #{mlp_forward.1} parent=1 // pred_region
      %s23 = ssub.s32 1024, 1024
      %24 = vsyncadd [#allocation3], %s23
      %s25 = sshll.u32 [#allocation2], 4
      %s26 = int_to_ptr.vmem [resolvable:$true] %s25
      %31 = dma.hbm_to_vmem [thread:$0]  %s3, 1024, %s26, [#allocation3], 64, 64, 4
    $region17: #{mlp_forward.1} parent=1 // pred_fallthru
      _
    // Predicated region
    $region18: #{mlp_forward.1} parent=1 // pred_check
      _
    $region19: #{mlp_forward.1} parent=1 // pred_check_branch
      %33 = sbr.rel (0) target = $region21
    $region20: #{mlp_forward.1} parent=1 // pred_region
      _
    $region21: #{mlp_forward.1} parent=1 // pred_fallthru
      _
    // Predicated region
    $region22: #{mlp_forward.1} parent=1 // pred_check
      _
    $region23: #{mlp_forward.1} parent=1 // pred_check_branch
      %35 = sbr.rel (0) target = $region25
    $region24: #{mlp_forward.1} parent=1 // pred_region
      %s37 = ssub.s32 1024, 1024
      %38 = vsyncadd [#allocation5], %s37
      %s39 = sshll.u32 [#allocation4], 4
      %s40 = int_to_ptr.vmem [resolvable:$true] %s39
      %45 = dma.hbm_to_vmem [thread:$0]  %s5, 1024, %s40, [#allocation5], 64, 64, 4
    $region25: #{mlp_forward.1} parent=1 // pred_fallthru
      _
    // Predicated region
    $region26: #{mlp_forward.1} parent=1 // pred_check
      _
    $region27: #{mlp_forward.1} parent=1 // pred_check_branch
      %47 = sbr.rel (0) target = $region29
    $region28: #{mlp_forward.1} parent=1 // pred_region
      _
    $region29: #{mlp_forward.1} parent=1 // pred_fallthru
      _
    // Predicated region
    $region30: #{mlp_forward.1} parent=1 // pred_check
      _
    $region31: #{mlp_forward.1} parent=1 // pred_check_branch
      %49 = sbr.rel (0) target = $region33
    $region32: #{mlp_forward.1} parent=1 // pred_region
      %50 = dma.done [#allocation3], 1024
    $region33: #{mlp_forward.1} parent=1 // pred_fallthru
      _
    // Predicated region
    $region34: #{mlp_forward.1} parent=1 // pred_check
      _
    $region35: #{mlp_forward.1} parent=1 // pred_check_branch
      %52 = sbr.rel (0) target = $region37
    $region36: #{mlp_forward.1} parent=1 // pred_region
      %53 = dma.done [#allocation5], 1024
    $region37: #{mlp_forward.1} parent=1 // pred_fallthru
      _
    %v55 = vld [vmem:[%s0] sm:$0xf]
    %v56 = vld [vmem:[%s1] sm:$0x3]
    %v57 = vld [vmem:[%s2] sm:$0x1]
    %v59 = vlaneseq
    %v60 = vshrl.u32 %v59, 7
    %v61 = vsub.s32 0, %v60
    %v62 = vrot.slane %v57, %v61
    %vm64 = vcmask 31744
    %v66 = vsel %vm64, %v55, 0
    %vm68 = vcmask 1041408
    %v70 = vsel %vm68, %v56, 0
    %72 = vmatprep.subr.bf16.mxu0 0
    %73 = vmatpush1.bf16.msra.mxu0 %v70
    %74 = vmatprep.subr.bf16.mxu0 0
    %75 = vmatpush1.bf16.msra.mxu0 0
    %76 = vmatprep.subr.bf16.mxu0 0
    %77 = vmatpush1.bf16.msra.mxu0 0
    %78 = vmatprep.subr.bf16.mxu0 0
    %79 = vmatpush1.bf16.msra.mxu0 0
    %80 = vmatprep.subr.bf16.mxu0 0
    %81 = vmatpush1.bf16.msra.mxu0 0
    %82 = vmatprep.subr.bf16.mxu0 0
    %83 = vmatpush1.bf16.msra.mxu0 0
    %84 = vmatprep.subr.bf16.mxu0 0
    %85 = vmatpush1.bf16.msra.mxu0 0
    %86 = vmatprep.subr.bf16.mxu0 0
    %87 = vmatpush1.bf16.msra.mxu0 0
    %88 = vmatprep.subr.bf16.mxu0 0
    %89 = vmatpush1.bf16.msra.mxu0 0
    %90 = vmatprep.subr.bf16.mxu0 0
    %91 = vmatpush1.bf16.msra.mxu0 0
    %92 = vmatprep.subr.bf16.mxu0 0
    %93 = vmatpush1.bf16.msra.mxu0 0
    %94 = vmatprep.subr.bf16.mxu0 0
    %95 = vmatpush1.bf16.msra.mxu0 0
    %96 = vmatprep.subr.bf16.mxu0 0
    %97 = vmatpush1.bf16.msra.mxu0 0
    %98 = vmatprep.subr.bf16.mxu0 0
    %99 = vmatpush1.bf16.msra.mxu0 0
    %100 = vmatprep.subr.bf16.mxu0 0
    %101 = vmatpush1.bf16.msra.mxu0 0
    %102 = vmatprep.subr.bf16.mxu0 0
    %103 = vmatpush1.bf16.msra.mxu0 0
    %104 = vmatprep.mubr.bf16.mxu0 0
    %105 = vmatmul.mubr.bf16.gmra.mrb[0].mxu0 %v66
    %v106 = vpop.f32.mrb[0].mxu0
    %v107 = vadd.f32 %v62, %v106
    %v108 = vpop.f32.mrb[0].mxu0
    %v109 = vpop.f32.mrb[0].mxu0
    %v110 = vpop.f32.mrb[0].mxu0
    %111 = vdwg.mxu0
    %v112 = vmax.f32 %v107, 0.0
    %v113 = vpack.c.bf16 %v112, %v112
    %v114 = vld [vmem:[#allocation2] sm:$0xf]
    %v115 = vld [vmem:[#allocation2 + $0x4] sm:$0xf]
    %v116 = vld [vmem:[#allocation2 + $0x8] sm:$0xf]
    %v117 = vld [vmem:[#allocation2 + $0xc] sm:$0xf]
    %v118 = vld [vmem:[#allocation2 + $0x10] sm:$0xf]
    %v119 = vld [vmem:[#allocation2 + $0x14] sm:$0xf]
    %v120 = vld [vmem:[#allocation2 + $0x18] sm:$0xf]
    %v121 = vld [vmem:[#allocation2 + $0x1c] sm:$0xf]
    %v122 = vld [vmem:[#allocation2 + $0x20] sm:$0xf]
    %v123 = vld [vmem:[#allocation2 + $0x24] sm:$0xf]
    %v124 = vld [vmem:[#allocation2 + $0x28] sm:$0xf]
    %v125 = vld [vmem:[#allocation2 + $0x2c] sm:$0xf]
    %v126 = vld [vmem:[#allocation2 + $0x30] sm:$0xf]
    %v127 = vld [vmem:[#allocation2 + $0x34] sm:$0xf]
    %v128 = vld [vmem:[#allocation2 + $0x38] sm:$0xf]
    %v129 = vld [vmem:[#allocation2 + $0x3c] sm:$0xf]
    %v130 = vld [vmem:[%s4] sm:$0x1]
    %v132 = vlaneseq
    %v133 = vshrl.u32 %v132, 7
    %v134 = vsub.s32 0, %v133
    %v135 = vrot.slane %v130, %v134
    %v153 = vunpack.c.l.b16 %v114
    %v154 = vunpack.c.l.b16 %v115
    %v155 = vunpack.c.l.b16 %v116
    %v156 = vunpack.c.l.b16 %v117
    %v157 = vunpack.c.l.b16 %v118
    %v158 = vunpack.c.l.b16 %v119
    %v159 = vunpack.c.l.b16 %v120
    %v160 = vunpack.c.l.b16 %v121
    %v161 = vunpack.c.l.b16 %v122
    %v162 = vunpack.c.l.b16 %v123
    %v163 = vunpack.c.l.b16 %v124
    %v164 = vunpack.c.l.b16 %v125
    %v165 = vunpack.c.l.b16 %v126
    %v166 = vunpack.c.l.b16 %v127
    %v167 = vunpack.c.l.b16 %v128
    %v168 = vunpack.c.l.b16 %v129
    %v169 = vpack.c.b16 %v154, %v153
    %v170 = vpack.c.b16 %v156, %v155
    %v171 = vpack.c.b16 %v158, %v157
    %v172 = vpack.c.b16 %v160, %v159
    %v173 = vpack.c.b16 %v162, %v161
    %v174 = vpack.c.b16 %v164, %v163
    %v175 = vpack.c.b16 %v166, %v165
    %v176 = vpack.c.b16 %v168, %v167
    %185 = vmatprep.subr.bf16.mxu0 0
    %186 = vmatpush1.bf16.msra.mxu0 %v169
    %187 = vmatprep.subr.bf16.mxu0 0
    %188 = vmatpush1.bf16.msra.mxu0 %v170
    %189 = vmatprep.subr.bf16.mxu0 0
    %190 = vmatpush1.bf16.msra.mxu0 %v171
    %191 = vmatprep.subr.bf16.mxu0 0
    %192 = vmatpush1.bf16.msra.mxu0 %v172
    %193 = vmatprep.subr.bf16.mxu0 0
    %194 = vmatpush1.bf16.msra.mxu0 %v173
    %195 = vmatprep.subr.bf16.mxu0 0
    %196 = vmatpush1.bf16.msra.mxu0 %v174
    %197 = vmatprep.subr.bf16.mxu0 0
    %198 = vmatpush1.bf16.msra.mxu0 %v175
    %199 = vmatprep.subr.bf16.mxu0 0
    %200 = vmatpush1.bf16.msra.mxu0 %v176
    %201 = vmatprep.subr.bf16.mxu0 0
    %202 = vmatpush1.bf16.msra.mxu0 0
    %203 = vmatprep.subr.bf16.mxu0 0
    %204 = vmatpush1.bf16.msra.mxu0 0
    %205 = vmatprep.subr.bf16.mxu0 0
    %206 = vmatpush1.bf16.msra.mxu0 0
    %207 = vmatprep.subr.bf16.mxu0 0
    %208 = vmatpush1.bf16.msra.mxu0 0
    %209 = vmatprep.subr.bf16.mxu0 0
    %210 = vmatpush1.bf16.msra.mxu0 0
    %211 = vmatprep.subr.bf16.mxu0 0
    %212 = vmatpush1.bf16.msra.mxu0 0
    %213 = vmatprep.subr.bf16.mxu0 0
    %214 = vmatpush1.bf16.msra.mxu0 0
    %215 = vmatprep.subr.bf16.mxu0 0
    %216 = vmatpush1.bf16.msra.mxu0 0
    %217 = vmatprep.mubr.bf16.mxu0 0
    %218 = vmatmul.mubr.bf16.gmra.mrb[0].mxu0 %v113
    %v219 = vpop.f32.mrb[0].mxu0
    %v220 = vadd.f32 %v135, %v219
    %v221 = vpop.f32.mrb[0].mxu0
    %v222 = vpop.f32.mrb[0].mxu0
    %v223 = vpop.f32.mrb[0].mxu0
    %224 = vdwg.mxu0
    %v225 = vmax.f32 %v220, 0.0
    %v226 = vpack.c.bf16 %v225, %v225
    %v227 = vld [vmem:[#allocation4] sm:$0xf]
    %v228 = vld [vmem:[#allocation4 + $0x4] sm:$0xf]
    %v229 = vld [vmem:[#allocation4 + $0x8] sm:$0xf]
    %v230 = vld [vmem:[#allocation4 + $0xc] sm:$0xf]
    %v231 = vld [vmem:[#allocation4 + $0x10] sm:$0xf]
    %v232 = vld [vmem:[#allocation4 + $0x14] sm:$0xf]
    %v233 = vld [vmem:[#allocation4 + $0x18] sm:$0xf]
    %v234 = vld [vmem:[#allocation4 + $0x1c] sm:$0xf]
    %v235 = vld [vmem:[#allocation4 + $0x20] sm:$0xf]
    %v236 = vld [vmem:[#allocation4 + $0x24] sm:$0xf]
    %v237 = vld [vmem:[#allocation4 + $0x28] sm:$0xf]
    %v238 = vld [vmem:[#allocation4 + $0x2c] sm:$0xf]
    %v239 = vld [vmem:[#allocation4 + $0x30] sm:$0xf]
    %v240 = vld [vmem:[#allocation4 + $0x34] sm:$0xf]
    %v241 = vld [vmem:[#allocation4 + $0x38] sm:$0xf]
    %v242 = vld [vmem:[#allocation4 + $0x3c] sm:$0xf]
    %v243 = vld [vmem:[%s6] sm:$0x1]
    %v245 = vlaneseq
    %v246 = vshrl.u32 %v245, 7
    %v247 = vsub.s32 0, %v246
    %v248 = vrot.slane %v243, %v247
    %v266 = vunpack.c.l.b16 %v227
    %v267 = vunpack.c.l.b16 %v228
    %v268 = vunpack.c.l.b16 %v229
    %v269 = vunpack.c.l.b16 %v230
    %v270 = vunpack.c.l.b16 %v231
    %v271 = vunpack.c.l.b16 %v232
    %v272 = vunpack.c.l.b16 %v233
    %v273 = vunpack.c.l.b16 %v234
    %v274 = vunpack.c.l.b16 %v235
    %v275 = vunpack.c.l.b16 %v236
    %v276 = vunpack.c.l.b16 %v237
    %v277 = vunpack.c.l.b16 %v238
    %v278 = vunpack.c.l.b16 %v239
    %v279 = vunpack.c.l.b16 %v240
    %v280 = vunpack.c.l.b16 %v241
    %v281 = vunpack.c.l.b16 %v242
    %v282 = vpack.c.b16 %v267, %v266
    %v283 = vpack.c.b16 %v269, %v268
    %v284 = vpack.c.b16 %v271, %v270
    %v285 = vpack.c.b16 %v273, %v272
    %v286 = vpack.c.b16 %v275, %v274
    %v287 = vpack.c.b16 %v277, %v276
    %v288 = vpack.c.b16 %v279, %v278
    %v289 = vpack.c.b16 %v281, %v280
    %298 = vmatprep.subr.bf16.mxu0 0
    %299 = vmatpush1.bf16.msra.mxu0 %v282
    %300 = vmatprep.subr.bf16.mxu0 0
    %301 = vmatpush1.bf16.msra.mxu0 %v283
    %302 = vmatprep.subr.bf16.mxu0 0
    %303 = vmatpush1.bf16.msra.mxu0 %v284
    %304 = vmatprep.subr.bf16.mxu0 0
    %305 = vmatpush1.bf16.msra.mxu0 %v285
    %306 = vmatprep.subr.bf16.mxu0 0
    %307 = vmatpush1.bf16.msra.mxu0 %v286
    %308 = vmatprep.subr.bf16.mxu0 0
    %309 = vmatpush1.bf16.msra.mxu0 %v287
    %310 = vmatprep.subr.bf16.mxu0 0
    %311 = vmatpush1.bf16.msra.mxu0 %v288
    %312 = vmatprep.subr.bf16.mxu0 0
    %313 = vmatpush1.bf16.msra.mxu0 %v289
    %314 = vmatprep.subr.bf16.mxu0 0
    %315 = vmatpush1.bf16.msra.mxu0 0
    %316 = vmatprep.subr.bf16.mxu0 0
    %317 = vmatpush1.bf16.msra.mxu0 0
    %318 = vmatprep.subr.bf16.mxu0 0
    %319 = vmatpush1.bf16.msra.mxu0 0
    %320 = vmatprep.subr.bf16.mxu0 0
    %321 = vmatpush1.bf16.msra.mxu0 0
    %322 = vmatprep.subr.bf16.mxu0 0
    %323 = vmatpush1.bf16.msra.mxu0 0
    %324 = vmatprep.subr.bf16.mxu0 0
    %325 = vmatpush1.bf16.msra.mxu0 0
    %326 = vmatprep.subr.bf16.mxu0 0
    %327 = vmatpush1.bf16.msra.mxu0 0
    %328 = vmatprep.subr.bf16.mxu0 0
    %329 = vmatpush1.bf16.msra.mxu0 0
    %330 = vmatprep.mubr.bf16.mxu0 0
    %331 = vmatmul.mubr.bf16.gmra.mrb[0].mxu0 %v226
    %v332 = vpop.f32.mrb[0].mxu0
    %v333 = vadd.f32 %v248, %v332
    %v334 = vpop.f32.mrb[0].mxu0
    %v335 = vpop.f32.mrb[0].mxu0
    %v336 = vpop.f32.mrb[0].mxu0
    %337 = vdwg.mxu0
    %vm338 = vcmask 64512
    %v339 = vsel %vm338, %v333, -inf
    %340 = vmax.xlane.f32.xlu0 %v339
    %v341 = vpop.xlane.xlu0 %340
    %v342 = vsub.f32 %v333, %v341
    %v343 = vmul.f32 %v342, 1.442695
    %v344 = vpow.pop %v343
    %v345 = vsel %vm338, %v344, 0.0
    %346 = vadd.xlane.f32.xlu0 %v345
    %v347 = vpop.xlane.xlu0 %346
    %v348 = vrcp.pop %v347
    %v349 = vmul.f32 %v344, %v348
    %350 = vst.msk [vmem:[%s7] sm:$0xff] %vm338, %v349
    // Predicated region
    $region38: #{mlp_forward.1} parent=1 // pred_check
      _
    $region39: #{mlp_forward.1} parent=1 // pred_check_branch
      %352 = sbr.rel (0) target = $region41
    $region40: #{mlp_forward.1} parent=1 // pred_region
      _
    $region41: #{mlp_forward.1} parent=1 // pred_fallthru
      _
    // Predicated region
    $region42: #{mlp_forward.1} parent=1 // pred_check
      _
    $region43: #{mlp_forward.1} parent=1 // pred_check_branch
      %354 = sbr.rel (0) target = $region45
    $region44: #{mlp_forward.1} parent=1 // pred_region
      _
    $region45: #{mlp_forward.1} parent=1 // pred_fallthru
      _
    %355 = vsyncpa [#allocation3], 1
    %356 = vsyncpa [#allocation5], 1

</llo_original>
